<compile_context>
chip_gen: v6e
topology: v6e:2x2x1
jax: 0.10.0
libtpu: 0.0.40
codegen_flags: <defaults>
</compile_context>

<pallas_src>
import math

import jax
import jax.numpy as jnp
from jax import lax
from jax.experimental import pallas as pl
from jax.experimental.pallas import tpu as pltpu


def _tensorcores_per_chip() -> int:
    """2 on v7x (dual TensorCore per chip), 1 on v5e/v6e and anything unknown."""
    try:
        kind = jax.devices()[0].device_kind.lower()
    except Exception:
        return 1
    return 2 if "v7" in kind else 1


# ----------------------------------------------------------------------------
# Pallas kernel: SemanticClassify (batch_norm=True path, training-mode BN).
# Handles I instances per invocation (I = 1 when sharded across cores on v7x,
# I = 2 when collapsed into a single invocation on v5e/v6e).
# ----------------------------------------------------------------------------
def _semantic_classify_kernel(x_ref, w_ref, fb_ref, ctx_ref, bias_ref,
                              wd_ref, bd_ref, wl_ref, bl_ref, out_ref):
    """
    x_ref   : (I, B, L, H)  LSTM outputs for I classify instances
    w_ref   : (I, 2H, H)    conv taps stacked [w_tap0; w_tap1], (in, out)
    fb_ref  : (B, H)        feedback (fdb LSTM final cell state)
    ctx_ref : (B, H)        context
    bias_ref: (1, H)        nn.Parameter bias
    wd_ref  : (H, Hh)       dense weight (in, out)
    bd_ref  : (1, Hh)       dense bias
    wl_ref  : (1, Hh)       logits weight row
    bl_ref  : (1, 1) SMEM   logits bias scalar
    out_ref : (I, 1, B)     logits (lane-dense: B on the lane dim)
    """
    I, B, L, H = x_ref.shape
    BL = B * L

    # Row-validity column: the (1,2) conv output only exists for l in [0, L-2].
    # Validity depends only on l, so a (BL, 1) column suffices and jnp.where
    # broadcasts it over the H lanes (no full-size int32 mask tensor).
    row = lax.broadcasted_iota(jnp.int32, (BL, 1), 0)
    valid = (row % L) < (L - 1)
    inv_n = jnp.float32(1.0 / (B * (L - 1)))

    # Shared operands: load / cast once, outside the instance loop.
    fb = fb_ref[...]
    ctx = ctx_ref[...]
    bias = bias_ref[...]
    wd_bf = wd_ref[...].astype(jnp.bfloat16)
    bd = bd_ref[...]
    wl = wl_ref[...]
    lb = bl_ref[0, 0]                                     # SMEM scalar

    for inst in range(I):                                 # static unroll (1 or 2)
        # Conv2d(H, H, (1,2)) collapsed into two MXU matmuls:
        #   conv[r] = x[r] @ w_tap0 + x[r+1] @ w_tap1
        # The "t+1" tap is built by rolling the matmul OUTPUT (XLU sublane
        # roll), keeping the roll off the MXU operand critical path.
        x2 = x_ref[inst].reshape(BL, H).astype(jnp.bfloat16)     # (BL, H)
        w_all = w_ref[inst].astype(jnp.bfloat16)                 # (2H, H)
        y0 = jnp.dot(x2, w_all[:H], preferred_element_type=jnp.float32)
        y1 = jnp.dot(x2, w_all[H:], preferred_element_type=jnp.float32)
        conv = y0 + pltpu.roll(y1, shift=BL - 1, axis=0)         # row r <- r+1

        # Train-mode BatchNorm2d(H) stats per channel over (batch, width) in
        # one pass (sum + sum-of-squares), biased variance, eps=1e-5.  The
        # conv bias was dropped: BN's mean subtraction cancels any
        # per-channel constant exactly (fresh module, gamma=1 / beta=0).
        conv_v = jnp.where(valid, conv, 0.0)
        mean = jnp.sum(conv_v, axis=0, keepdims=True) * inv_n           # (1, H)
        ex2 = jnp.sum(conv_v * conv_v, axis=0, keepdims=True) * inv_n   # (1, H)
        var = jnp.maximum(ex2 - mean * mean, 0.0)      # clamp cancellation -> no NaN

        # MaxPool over the sequence FIRST (positive per-channel affine and
        # monotone ReLU both commute with max), then normalise + ReLU on the
        # pooled (B, H) result only.
        pooled_raw = jnp.max(
            jnp.where(valid, conv, -jnp.inf).reshape(B, L, H), axis=1)   # (B, H)
        pooled = jnp.maximum((pooled_raw - mean) * lax.rsqrt(var + 1e-5), 0.0)

        # fused = ReLU(pooled + context + feedback + bias)
        fused = jnp.maximum(pooled + ctx + fb + bias, 0.0)

        # dense: Linear(H, H/2) + ReLU  (bf16 MXU operands, f32 accumulate).
        dense = jnp.maximum(
            jnp.dot(fused.astype(jnp.bfloat16), wd_bf,
                    preferred_element_type=jnp.float32) + bd, 0.0)       # (B, Hh)

        # Train-mode BatchNorm2d(H/2) over the batch (fresh, gamma=1/beta=0).
        d_mean = jnp.mean(dense, axis=0, keepdims=True)
        d_var = jnp.mean(jnp.square(dense - d_mean), axis=0, keepdims=True)
        dense_bn = (dense - d_mean) * lax.rsqrt(d_var + 1e-5)

        # logits: Linear(H/2, 1) as a VPU multiply + lane reduce (an N=1
        # matmul would waste the MXU); stored lane-dense as a (1, B) row.
        logit = jnp.sum(dense_bn * wl, axis=-1) + lb                     # (B,)
        out_ref[inst] = logit.reshape(1, B)


def semantic_classify_pair(data_pairs, conv_w, feedback, context, bias,
                           dense_w, dense_b, logits_w, logits_b):
    """Runs both SemanticClassify instances (neg, pos).

    On v7x (2 TensorCores/chip) the two instances shard across cores via a
    grid=(2,) "parallel" axis; on single-TC v5e/v6e both instances run inside
    one kernel invocation (a 2-step grid there is pure per-step overhead).

    data_pairs: (2, B, L, H) LSTM outputs stacked as [neg, pos]
    conv_w:     (2, 2H, H)   per-instance fresh conv weights, stacked taps
                             [w_tap0; w_tap1] in (in, out) orientation
                             (PyTorch Conv2d weight[:, :, 0, k].T).
    Returns (2, 1, B) logits (lane-dense).
    """
    two, B, L, H = data_pairs.shape
    Hh = dense_w.shape[1]

    if _tensorcores_per_chip() >= 2:
        # TODO(synk): if the xprof trace shows the compiler serializing both
        # steps onto one core, switch to pl.core_map over a 2-core mesh.
        n_steps, inst_blk, dim_sem = two, 1, ("parallel",)
    else:
        n_steps, inst_blk, dim_sem = 1, two, ("arbitrary",)

    grid_spec = pltpu.PrefetchScalarGridSpec(
        num_scalar_prefetch=0,
        grid=(n_steps,),
        in_specs=[
            pl.BlockSpec((inst_blk, B, L, H), lambda i: (i, 0, 0, 0)),   # data
            pl.BlockSpec((inst_blk, 2 * H, H), lambda i: (i, 0, 0)),     # conv W
            pl.BlockSpec((B, H), lambda i: (0, 0)),                      # feedback
            pl.BlockSpec((B, H), lambda i: (0, 0)),                      # context
            pl.BlockSpec((1, H), lambda i: (0, 0)),                      # bias
            pl.BlockSpec((H, Hh), lambda i: (0, 0)),                     # dense W
            pl.BlockSpec((1, Hh), lambda i: (0, 0)),                     # dense b
            pl.BlockSpec((1, Hh), lambda i: (0, 0)),                     # logits W
            pl.BlockSpec(memory_space=pltpu.MemorySpace.SMEM),           # logits b
        ],
        out_specs=pl.BlockSpec((inst_blk, 1, B), lambda i: (i, 0, 0)),
    )

    # TODO(synk): for production B*L*H add an (instance, bl_tile) grid with the
    # bl_tile reduction axis last + "arbitrary", VMEM sum/sumsq/running-max
    # scratch finalized under pl.when, and an explicit vmem_limit_bytes (v7x
    # has only 64 MiB physical VMEM); at demo shapes everything fits in VMEM.
    return pl.pallas_call(
        _semantic_classify_kernel,
        out_shape=jax.ShapeDtypeStruct((two, 1, B), jnp.float32),
        grid_spec=grid_spec,
        compiler_params=pltpu.CompilerParams(dimension_semantics=dim_sem),
    )(data_pairs, conv_w, feedback, context, bias,
      dense_w, dense_b, logits_w, logits_b)


# ----------------------------------------------------------------------------
# Plain-JAX glue: embedding + single-layer LSTM (batch_first, no dropout)
# ----------------------------------------------------------------------------
def lstm_forward(lstm_params, x):
    """x: (N, L, E) -> (outputs (N, L, H), final cell state c_n (N, H))."""
    w_ih, w_hh, b_ih, b_hh = (lstm_params['w_ih'], lstm_params['w_hh'],
                              lstm_params['b_ih'], lstm_params['b_hh'])
    N, L, E = x.shape
    H = w_hh.shape[1]

    # Hoist the input projection out of the recurrence: one MXU-friendly
    # matmul instead of L tiny ones inside the scan; fold both biases in.
    xw = (x.reshape(N * L, E) @ w_ih.T + (b_ih + b_hh)).reshape(N, L, 4 * H)
    w_hh_t = w_hh.T                                          # (H, 4H)

    def step(carry, xw_t):
        h, c = carry
        gates = xw_t + h @ w_hh_t
        i, f, g, o = jnp.split(gates, 4, axis=-1)
        i = jax.nn.sigmoid(i)
        f = jax.nn.sigmoid(f)
        g = jnp.tanh(g)
        o = jax.nn.sigmoid(o)
        c = f * c + i * g
        h = o * jnp.tanh(c)
        return (h, c), h

    h0 = jnp.zeros((N, H), jnp.float32)
    c0 = jnp.zeros((N, H), jnp.float32)
    (_, c_last), hs = lax.scan(step, (h0, c0), jnp.swapaxes(xw, 0, 1))
    outputs = jnp.swapaxes(hs, 0, 1)                         # (N, L, H)
    return outputs, c_last                                   # c_last == hidden[1][-1]


# ----------------------------------------------------------------------------
# Parameter init (deterministic, synthetic — shapes match the PyTorch module)
# ----------------------------------------------------------------------------
def init_params(key, vocab_size, embedding_size, hidden_size):
    H = hidden_size
    Hh = H // 2
    ks = jax.random.split(key, 10)
    k_lstm = 1.0 / math.sqrt(H)
    k_dense = 1.0 / math.sqrt(H)
    k_logits = 1.0 / math.sqrt(Hh)
    u = lambda k, shape, b: jax.random.uniform(k, shape, jnp.float32, -b, b)
    return {
        'embedding': 0.1 * jax.random.normal(ks[0], (vocab_size, embedding_size),
                                             jnp.float32),
        'lstm': {
            'w_ih': u(ks[1], (4 * H, embedding_size), k_lstm),
            'w_hh': u(ks[2], (4 * H, H), k_lstm),
            'b_ih': u(ks[3], (4 * H,), k_lstm),
            'b_hh': u(ks[4], (4 * H,), k_lstm),
        },
        'bias': jax.random.normal(ks[5], (1, H), jnp.float32),   # nn.Parameter
        # (in, out) orientation — transpose of PyTorch nn.Linear.weight.
        'dense_w': u(ks[6], (H, Hh), k_dense),
        'dense_b': u(ks[7], (1, Hh), k_dense),
        # Row form == PyTorch nn.Linear(Hh, 1).weight's native (1, Hh) shape.
        'logits_w': u(ks[8], (1, Hh), k_logits),
        'logits_b': u(ks[9], (1, 1), k_logits),
    }


def init_conv_params(key, hidden_size):
    """Fresh nn.Conv2d(H, H, (1, 2)) weights, stacked as (2H, H) =
    [w_tap0; w_tap1] in (in, out) orientation (PyTorch weight[:, :, 0, k].T).
    The conv bias is omitted: the train-mode BatchNorm that immediately
    follows cancels any per-channel constant exactly."""
    H = hidden_size
    bound = 1.0 / math.sqrt(H * 2)
    return jax.random.uniform(key, (2 * H, H), jnp.float32, -bound, bound)


# ----------------------------------------------------------------------------
# Full forward (returns disc_sem_loss, gen_sem_loss)
# ----------------------------------------------------------------------------
def semantic_discriminator_forward(params, conv_w_neg, conv_w_pos,
                                   neg, pos, fdb, context):
    B = neg.shape[0]

    # One batched LSTM scan for all three sequences (neg | pos | fdb).
    ids = jnp.concatenate([neg, pos, fdb], axis=0)           # (3B, L)
    embedded = params['embedding'][ids]                      # (3B, L, E)
    outputs, c_last = lstm_forward(params['lstm'], embedded)

    outputs_neg = outputs[:B]
    outputs_pos = outputs[B:2 * B]
    last_hidden_fdb = c_last[2 * B:]                         # hidden_fdb[1][-1]

    data_pairs = jnp.stack([outputs_neg, outputs_pos], axis=0)   # (2, B, L, H)
    conv_w = jnp.stack([conv_w_neg, conv_w_pos], axis=0)         # (2, 2H, H)

    logits = semantic_classify_pair(
        data_pairs, conv_w, last_hidden_fdb, context, params['bias'],
        params['dense_w'], params['dense_b'],
        params['logits_w'], params['logits_b'])                  # (2, 1, B)

    neg_logits, pos_logits = logits[0, 0], logits[1, 0]          # (B,), (B,)
    disc_sem_loss = jnp.mean(neg_logits - pos_logits)
    gen_sem_loss = jnp.mean(neg_logits)

    # TODO(synk): the WGAN-GP gradient-penalty branch (alpha-interpolated
    # samples + register_hook/backward autograd through SemanticClassify) has
    # no clean forward-only Pallas equivalent and is omitted.
    return disc_sem_loss, gen_sem_loss


# ----------------------------------------------------------------------------
if __name__ == "__main__":
    VOCAB, EMB, HIDDEN = 50, 32, 32
    B, L = 2, 8

    root = jax.random.PRNGKey(0)
    (k_params, k_cneg, k_cpos, k_neg, k_pos, k_fdb,
     k_ctx) = jax.random.split(root, 7)

    params = init_params(k_params, VOCAB, EMB, HIDDEN)
    conv_w_neg = init_conv_params(k_cneg, HIDDEN)   # PyTorch re-randomizes per call
    conv_w_pos = init_conv_params(k_cpos, HIDDEN)

    neg = jax.random.randint(k_neg, (B, L), 0, VOCAB, dtype=jnp.int32)
    pos = jax.random.randint(k_pos, (B, L), 0, VOCAB, dtype=jnp.int32)
    fdb = jax.random.randint(k_fdb, (B, L), 0, VOCAB, dtype=jnp.int32)
    context = jax.random.normal(k_ctx, (B, HIDDEN), jnp.float32)

    fwd = jax.jit(semantic_discriminator_forward)
    disc_loss, gen_loss = fwd(params, conv_w_neg, conv_w_pos,
                              neg, pos, fdb, context)
    jax.block_until_ready((disc_loss, gen_loss))
    assert bool(jnp.isfinite(disc_loss)) and bool(jnp.isfinite(gen_loss))
    print("KERNEL_OK")
</pallas_src>

<mosaic_0001>
module attributes {stable_mosaic.version = 11 : i64} {
  func.func @_semantic_classify_kernel(%arg0: i32, %arg1: memref<2x2x8x32xf32, #tpu.memory_space<vmem>>, %arg2: memref<2x64x32xf32, #tpu.memory_space<vmem>>, %arg3: memref<2x32xf32, #tpu.memory_space<vmem>>, %arg4: memref<2x32xf32, #tpu.memory_space<vmem>>, %arg5: memref<1x32xf32, #tpu.memory_space<vmem>>, %arg6: memref<32x16xf32, #tpu.memory_space<vmem>>, %arg7: memref<1x16xf32, #tpu.memory_space<vmem>>, %arg8: memref<1x16xf32, #tpu.memory_space<vmem>>, %arg9: memref<1x1xf32, #tpu.memory_space<smem>>, %arg10: memref<2x1x2xf32, #tpu.memory_space<vmem>>) attributes {dimension_semantics = [#tpu.dimension_semantics<arbitrary>], iteration_bounds = array<i64: 1>, scalar_prefetch = 0 : i64, scratch_operands = 0 : i64, tpu.core_type = #tpu.core_type<tc>, window_params = [{transform_indices = @transform_0, window_bounds = array<i64: 2, 2, 8, 32>}, {transform_indices = @transform_1, window_bounds = array<i64: 2, 64, 32>}, {pipeline_mode = #tpu.pipeline_mode<synchronous>, transform_indices = @transform_2, window_bounds = array<i64: 2, 32>}, {pipeline_mode = #tpu.pipeline_mode<synchronous>, transform_indices = @transform_3, window_bounds = array<i64: 2, 32>}, {pipeline_mode = #tpu.pipeline_mode<synchronous>, transform_indices = @transform_4, window_bounds = array<i64: 1, 32>}, {pipeline_mode = #tpu.pipeline_mode<synchronous>, transform_indices = @transform_5, window_bounds = array<i64: 32, 16>}, {pipeline_mode = #tpu.pipeline_mode<synchronous>, transform_indices = @transform_6, window_bounds = array<i64: 1, 16>}, {pipeline_mode = #tpu.pipeline_mode<synchronous>, transform_indices = @transform_7, window_bounds = array<i64: 1, 16>}, {transform_indices = @transform_8, window_bounds = array<i64: 1, 1>}, {transform_indices = @transform_9, window_bounds = array<i64: 2, 1, 2>}]} {
    %0 = tpu.iota {dimensions = array<i32: 0>} : vector<16x1xi32>
    %c8_i32 = arith.constant 8 : i32
    %c0_i32 = arith.constant 0 : i32
    %1 = arith.cmpi eq, %c8_i32, %c0_i32 : i32
    %c1_i32 = arith.constant 1 : i32
    %2 = arith.select %1, %c1_i32, %c8_i32 : i32
    %3 = vector.broadcast %2 : i32 to vector<16x1xi32>
    %4 = arith.remsi %0, %3 : vector<16x1xi32>
    %c0_i32_0 = arith.constant 0 : i32
    %5 = vector.broadcast %c0_i32_0 : i32 to vector<16x1xi32>
    %6 = arith.cmpi ne, %4, %5 : vector<16x1xi32>
    %c0_i32_1 = arith.constant 0 : i32
    %7 = vector.broadcast %c0_i32_1 : i32 to vector<16x1xi32>
    %8 = arith.cmpi slt, %4, %7 : vector<16x1xi32>
    %c0_i32_2 = arith.constant 0 : i32
    %9 = arith.cmpi slt, %2, %c0_i32_2 : i32
    %10 = vector.broadcast %9 : i1 to vector<16x1xi1>
    %11 = vector.broadcast %10 : vector<16x1xi1> to vector<16x1xi1>
    %12 = arith.xori %8, %11 : vector<16x1xi1>
    %13 = arith.andi %12, %6 : vector<16x1xi1>
    %14 = vector.broadcast %2 : i32 to vector<16x1xi32>
    %15 = arith.addi %4, %14 : vector<16x1xi32>
    %16 = arith.select %13, %15, %4 : vector<16x1xi1>, vector<16x1xi32>
    %c7_i32 = arith.constant 7 : i32
    %17 = vector.broadcast %c7_i32 : i32 to vector<16x1xi32>
    %18 = arith.cmpi slt, %16, %17 : vector<16x1xi32>
    %c0 = arith.constant 0 : index
    %c0_3 = arith.constant 0 : index
    %19 = vector.load %arg3[%c0, %c0_3] : memref<2x32xf32, #tpu.memory_space<vmem>>, vector<2x32xf32>
    %c0_4 = arith.constant 0 : index
    %c0_5 = arith.constant 0 : index
    %20 = vector.load %arg4[%c0_4, %c0_5] : memref<2x32xf32, #tpu.memory_space<vmem>>, vector<2x32xf32>
    %c0_6 = arith.constant 0 : index
    %c0_7 = arith.constant 0 : index
    %21 = vector.load %arg5[%c0_6, %c0_7] : memref<1x32xf32, #tpu.memory_space<vmem>>, vector<1x32xf32>
    %c0_8 = arith.constant 0 : index
    %c0_9 = arith.constant 0 : index
    %22 = vector.load %arg6[%c0_8, %c0_9] : memref<32x16xf32, #tpu.memory_space<vmem>>, vector<32x16xf32>
    %23 = arith.truncf %22 : vector<32x16xf32> to vector<32x16xbf16>
    %c0_10 = arith.constant 0 : index
    %c0_11 = arith.constant 0 : index
    %24 = vector.load %arg7[%c0_10, %c0_11] : memref<1x16xf32, #tpu.memory_space<vmem>>, vector<1x16xf32>
    %c0_12 = arith.constant 0 : index
    %c0_13 = arith.constant 0 : index
    %25 = vector.load %arg8[%c0_12, %c0_13] : memref<1x16xf32, #tpu.memory_space<vmem>>, vector<1x16xf32>
    %c0_14 = arith.constant 0 : index
    %c0_15 = arith.constant 0 : index
    %26 = memref.load %arg9[%c0_14, %c0_15] : memref<1x1xf32, #tpu.memory_space<smem>>
    %c0_16 = arith.constant 0 : index
    %c0_17 = arith.constant 0 : index
    %c0_18 = arith.constant 0 : index
    %c0_19 = arith.constant 0 : index
    %27 = vector.load %arg1[%c0_16, %c0_17, %c0_18, %c0_19] : memref<2x2x8x32xf32, #tpu.memory_space<vmem>>, vector<1x2x8x32xf32>
    %28 = vector.shape_cast %27 : vector<1x2x8x32xf32> to vector<2x8x32xf32>
    %29 = vector.shape_cast %28 : vector<2x8x32xf32> to vector<16x32xf32>
    %30 = arith.truncf %29 : vector<16x32xf32> to vector<16x32xbf16>
    %c0_20 = arith.constant 0 : index
    %c0_21 = arith.constant 0 : index
    %c0_22 = arith.constant 0 : index
    %31 = vector.load %arg2[%c0_20, %c0_21, %c0_22] : memref<2x64x32xf32, #tpu.memory_space<vmem>>, vector<1x64x32xf32>
    %32 = vector.shape_cast %31 : vector<1x64x32xf32> to vector<64x32xf32>
    %33 = arith.truncf %32 : vector<64x32xf32> to vector<64x32xbf16>
    %34 = vector.extract_strided_slice %33 {offsets = [0, 0], sizes = [32, 32], strides = [1, 1]} : vector<64x32xbf16> to vector<32x32xbf16>
    %cst = arith.constant dense<0.000000e+00> : vector<16x32xf32>
    %35 = tpu.matmul %30, %34, %cst {dimension_numbers = #tpu.dot_dimension_numbers<[1], [0], [0], [1], [0, 0, 1, 1], [], []>} : vector<16x32xbf16>, vector<32x32xbf16>, vector<16x32xf32> -> vector<16x32xf32>
    %36 = vector.extract_strided_slice %33 {offsets = [32, 0], sizes = [32, 32], strides = [1, 1]} : vector<64x32xbf16> to vector<32x32xbf16>
    %cst_23 = arith.constant dense<0.000000e+00> : vector<16x32xf32>
    %37 = tpu.matmul %30, %36, %cst_23 {dimension_numbers = #tpu.dot_dimension_numbers<[1], [0], [0], [1], [0, 0, 1, 1], [], []>} : vector<16x32xbf16>, vector<32x32xbf16>, vector<16x32xf32> -> vector<16x32xf32>
    %c15_i32 = arith.constant 15 : i32
    %38 = tpu.dynamic_rotate %37 by %c15_i32 dim 0 : vector<16x32xf32>, i32 -> vector<16x32xf32>
    %39 = arith.addf %35, %38 : vector<16x32xf32>
    %cst_24 = arith.constant 0.000000e+00 : f32
    %40 = vector.shape_cast %18 : vector<16x1xi1> to vector<16x1xi1>
    %41 = vector.broadcast %40 : vector<16x1xi1> to vector<16x32xi1>
    %42 = vector.broadcast %cst_24 : f32 to vector<16x32xf32>
    %43 = arith.select %41, %39, %42 : vector<16x32xi1>, vector<16x32xf32>
    %cst_25 = arith.constant dense<0.000000e+00> : vector<32xf32>
    %44 = vector.multi_reduction <add>, %43, %cst_25 [0] : vector<16x32xf32> to vector<32xf32>
    %45 = vector.shape_cast %44 : vector<32xf32> to vector<1x32xf32>
    %cst_26 = arith.constant 0.0714285746 : f32
    %46 = vector.broadcast %cst_26 : f32 to vector<1x32xf32>
    %47 = arith.mulf %45, %46 : vector<1x32xf32>
    %48 = arith.mulf %43, %43 : vector<16x32xf32>
    %cst_27 = arith.constant dense<0.000000e+00> : vector<32xf32>
    %49 = vector.multi_reduction <add>, %48, %cst_27 [0] : vector<16x32xf32> to vector<32xf32>
    %50 = vector.shape_cast %49 : vector<32xf32> to vector<1x32xf32>
    %cst_28 = arith.constant 0.0714285746 : f32
    %51 = vector.broadcast %cst_28 : f32 to vector<1x32xf32>
    %52 = arith.mulf %50, %51 : vector<1x32xf32>
    %53 = arith.mulf %47, %47 : vector<1x32xf32>
    %54 = arith.subf %52, %53 : vector<1x32xf32>
    %cst_29 = arith.constant 0.000000e+00 : f32
    %55 = vector.broadcast %cst_29 : f32 to vector<1x32xf32>
    %56 = arith.maximumf %54, %55 : vector<1x32xf32>
    %cst_30 = arith.constant 0xFF800000 : f32
    %57 = vector.shape_cast %18 : vector<16x1xi1> to vector<16x1xi1>
    %58 = vector.broadcast %57 : vector<16x1xi1> to vector<16x32xi1>
    %59 = vector.broadcast %cst_30 : f32 to vector<16x32xf32>
    %60 = arith.select %58, %39, %59 : vector<16x32xi1>, vector<16x32xf32>
    %61 = vector.shape_cast %60 : vector<16x32xf32> to vector<2x8x32xf32>
    %cst_31 = arith.constant dense<0xFF800000> : vector<2x32xf32>
    %62 = vector.multi_reduction <maximumf>, %61, %cst_31 [1] : vector<2x8x32xf32> to vector<2x32xf32>
    %63 = vector.broadcast %47 : vector<1x32xf32> to vector<2x32xf32>
    %64 = arith.subf %62, %63 : vector<2x32xf32>
    %cst_32 = arith.constant 9.99999974E-6 : f32
    %65 = vector.broadcast %cst_32 : f32 to vector<1x32xf32>
    %66 = arith.addf %56, %65 : vector<1x32xf32>
    %67 = math.rsqrt %66 : vector<1x32xf32>
    %68 = vector.broadcast %67 : vector<1x32xf32> to vector<2x32xf32>
    %69 = arith.mulf %64, %68 : vector<2x32xf32>
    %cst_33 = arith.constant 0.000000e+00 : f32
    %70 = vector.broadcast %cst_33 : f32 to vector<2x32xf32>
    %71 = arith.maximumf %69, %70 : vector<2x32xf32>
    %72 = arith.addf %71, %20 : vector<2x32xf32>
    %73 = arith.addf %72, %19 : vector<2x32xf32>
    %74 = vector.broadcast %21 : vector<1x32xf32> to vector<2x32xf32>
    %75 = arith.addf %73, %74 : vector<2x32xf32>
    %cst_34 = arith.constant 0.000000e+00 : f32
    %76 = vector.broadcast %cst_34 : f32 to vector<2x32xf32>
    %77 = arith.maximumf %75, %76 : vector<2x32xf32>
    %78 = arith.truncf %77 : vector<2x32xf32> to vector<2x32xbf16>
    %cst_35 = arith.constant dense<0.000000e+00> : vector<2x16xf32>
    %79 = tpu.matmul %78, %23, %cst_35 {dimension_numbers = #tpu.dot_dimension_numbers<[1], [0], [0], [1], [0, 0, 1, 1], [], []>} : vector<2x32xbf16>, vector<32x16xbf16>, vector<2x16xf32> -> vector<2x16xf32>
    %80 = vector.broadcast %24 : vector<1x16xf32> to vector<2x16xf32>
    %81 = arith.addf %79, %80 : vector<2x16xf32>
    %cst_36 = arith.constant 0.000000e+00 : f32
    %82 = vector.broadcast %cst_36 : f32 to vector<2x16xf32>
    %83 = arith.maximumf %81, %82 : vector<2x16xf32>
    %cst_37 = arith.constant dense<0.000000e+00> : vector<16xf32>
    %84 = vector.multi_reduction <add>, %83, %cst_37 [0] : vector<2x16xf32> to vector<16xf32>
    %85 = vector.shape_cast %84 : vector<16xf32> to vector<1x16xf32>
    %cst_38 = arith.constant 2.000000e+00 : f32
    %86 = vector.broadcast %cst_38 : f32 to vector<1x16xf32>
    %87 = arith.divf %85, %86 : vector<1x16xf32>
    %88 = vector.broadcast %87 : vector<1x16xf32> to vector<2x16xf32>
    %89 = arith.subf %83, %88 : vector<2x16xf32>
    %90 = arith.mulf %89, %89 : vector<2x16xf32>
    %cst_39 = arith.constant dense<0.000000e+00> : vector<16xf32>
    %91 = vector.multi_reduction <add>, %90, %cst_39 [0] : vector<2x16xf32> to vector<16xf32>
    %92 = vector.shape_cast %91 : vector<16xf32> to vector<1x16xf32>
    %cst_40 = arith.constant 2.000000e+00 : f32
    %93 = vector.broadcast %cst_40 : f32 to vector<1x16xf32>
    %94 = arith.divf %92, %93 : vector<1x16xf32>
    %95 = vector.broadcast %87 : vector<1x16xf32> to vector<2x16xf32>
    %96 = arith.subf %83, %95 : vector<2x16xf32>
    %cst_41 = arith.constant 9.99999974E-6 : f32
    %97 = vector.broadcast %cst_41 : f32 to vector<1x16xf32>
    %98 = arith.addf %94, %97 : vector<1x16xf32>
    %99 = math.rsqrt %98 : vector<1x16xf32>
    %100 = vector.broadcast %99 : vector<1x16xf32> to vector<2x16xf32>
    %101 = arith.mulf %96, %100 : vector<2x16xf32>
    %102 = vector.broadcast %25 : vector<1x16xf32> to vector<2x16xf32>
    %103 = arith.mulf %101, %102 : vector<2x16xf32>
    %cst_42 = arith.constant dense<0.000000e+00> : vector<2xf32>
    %104 = vector.multi_reduction <add>, %103, %cst_42 [1] : vector<2x16xf32> to vector<2xf32>
    %105 = vector.broadcast %26 : f32 to vector<2xf32>
    %106 = arith.addf %104, %105 : vector<2xf32>
    %107 = vector.shape_cast %106 : vector<2xf32> to vector<1x2xf32>
    %c0_43 = arith.constant 0 : index
    %c0_44 = arith.constant 0 : index
    %c0_45 = arith.constant 0 : index
    %108 = vector.load %arg10[%c0_43, %c0_44, %c0_45] : memref<2x1x2xf32, #tpu.memory_space<vmem>>, vector<1x1x2xf32>
    %109 = vector.shape_cast %108 : vector<1x1x2xf32> to vector<1x2xf32>
    %110 = vector.shape_cast %107 : vector<1x2xf32> to vector<1x1x2xf32>
    tpu.vector_store %arg10[%c0_43, %c0_44, %c0_45], %110 {strides = array<i32>} : memref<2x1x2xf32, #tpu.memory_space<vmem>>, vector<1x1x2xf32>,
    %c1 = arith.constant 1 : index
    %c0_46 = arith.constant 0 : index
    %c0_47 = arith.constant 0 : index
    %c0_48 = arith.constant 0 : index
    %111 = vector.load %arg1[%c1, %c0_46, %c0_47, %c0_48] : memref<2x2x8x32xf32, #tpu.memory_space<vmem>>, vector<1x2x8x32xf32>
    %112 = vector.shape_cast %111 : vector<1x2x8x32xf32> to vector<2x8x32xf32>
    %113 = vector.shape_cast %112 : vector<2x8x32xf32> to vector<16x32xf32>
    %114 = arith.truncf %113 : vector<16x32xf32> to vector<16x32xbf16>
    %c1_49 = arith.constant 1 : index
    %c0_50 = arith.constant 0 : index
    %c0_51 = arith.constant 0 : index
    %115 = vector.load %arg2[%c1_49, %c0_50, %c0_51] : memref<2x64x32xf32, #tpu.memory_space<vmem>>, vector<1x64x32xf32>
    %116 = vector.shape_cast %115 : vector<1x64x32xf32> to vector<64x32xf32>
    %117 = arith.truncf %116 : vector<64x32xf32> to vector<64x32xbf16>
    %118 = vector.extract_strided_slice %117 {offsets = [0, 0], sizes = [32, 32], strides = [1, 1]} : vector<64x32xbf16> to vector<32x32xbf16>
    %cst_52 = arith.constant dense<0.000000e+00> : vector<16x32xf32>
    %119 = tpu.matmul %114, %118, %cst_52 {dimension_numbers = #tpu.dot_dimension_numbers<[1], [0], [0], [1], [0, 0, 1, 1], [], []>} : vector<16x32xbf16>, vector<32x32xbf16>, vector<16x32xf32> -> vector<16x32xf32>
    %120 = vector.extract_strided_slice %117 {offsets = [32, 0], sizes = [32, 32], strides = [1, 1]} : vector<64x32xbf16> to vector<32x32xbf16>
    %cst_53 = arith.constant dense<0.000000e+00> : vector<16x32xf32>
    %121 = tpu.matmul %114, %120, %cst_53 {dimension_numbers = #tpu.dot_dimension_numbers<[1], [0], [0], [1], [0, 0, 1, 1], [], []>} : vector<16x32xbf16>, vector<32x32xbf16>, vector<16x32xf32> -> vector<16x32xf32>
    %c15_i32_54 = arith.constant 15 : i32
    %122 = tpu.dynamic_rotate %121 by %c15_i32_54 dim 0 : vector<16x32xf32>, i32 -> vector<16x32xf32>
    %123 = arith.addf %119, %122 : vector<16x32xf32>
    %cst_55 = arith.constant 0.000000e+00 : f32
    %124 = vector.shape_cast %18 : vector<16x1xi1> to vector<16x1xi1>
    %125 = vector.broadcast %124 : vector<16x1xi1> to vector<16x32xi1>
    %126 = vector.broadcast %cst_55 : f32 to vector<16x32xf32>
    %127 = arith.select %125, %123, %126 : vector<16x32xi1>, vector<16x32xf32>
    %cst_56 = arith.constant dense<0.000000e+00> : vector<32xf32>
    %128 = vector.multi_reduction <add>, %127, %cst_56 [0] : vector<16x32xf32> to vector<32xf32>
    %129 = vector.shape_cast %128 : vector<32xf32> to vector<1x32xf32>
    %cst_57 = arith.constant 0.0714285746 : f32
    %130 = vector.broadcast %cst_57 : f32 to vector<1x32xf32>
    %131 = arith.mulf %129, %130 : vector<1x32xf32>
    %132 = arith.mulf %127, %127 : vector<16x32xf32>
    %cst_58 = arith.constant dense<0.000000e+00> : vector<32xf32>
    %133 = vector.multi_reduction <add>, %132, %cst_58 [0] : vector<16x32xf32> to vector<32xf32>
    %134 = vector.shape_cast %133 : vector<32xf32> to vector<1x32xf32>
    %cst_59 = arith.constant 0.0714285746 : f32
    %135 = vector.broadcast %cst_59 : f32 to vector<1x32xf32>
    %136 = arith.mulf %134, %135 : vector<1x32xf32>
    %137 = arith.mulf %131, %131 : vector<1x32xf32>
    %138 = arith.subf %136, %137 : vector<1x32xf32>
    %cst_60 = arith.constant 0.000000e+00 : f32
    %139 = vector.broadcast %cst_60 : f32 to vector<1x32xf32>
    %140 = arith.maximumf %138, %139 : vector<1x32xf32>
    %cst_61 = arith.constant 0xFF800000 : f32
    %141 = vector.shape_cast %18 : vector<16x1xi1> to vector<16x1xi1>
    %142 = vector.broadcast %141 : vector<16x1xi1> to vector<16x32xi1>
    %143 = vector.broadcast %cst_61 : f32 to vector<16x32xf32>
    %144 = arith.select %142, %123, %143 : vector<16x32xi1>, vector<16x32xf32>
    %145 = vector.shape_cast %144 : vector<16x32xf32> to vector<2x8x32xf32>
    %cst_62 = arith.constant dense<0xFF800000> : vector<2x32xf32>
    %146 = vector.multi_reduction <maximumf>, %145, %cst_62 [1] : vector<2x8x32xf32> to vector<2x32xf32>
    %147 = vector.broadcast %131 : vector<1x32xf32> to vector<2x32xf32>
    %148 = arith.subf %146, %147 : vector<2x32xf32>
    %cst_63 = arith.constant 9.99999974E-6 : f32
    %149 = vector.broadcast %cst_63 : f32 to vector<1x32xf32>
    %150 = arith.addf %140, %149 : vector<1x32xf32>
    %151 = math.rsqrt %150 : vector<1x32xf32>
    %152 = vector.broadcast %151 : vector<1x32xf32> to vector<2x32xf32>
    %153 = arith.mulf %148, %152 : vector<2x32xf32>
    %cst_64 = arith.constant 0.000000e+00 : f32
    %154 = vector.broadcast %cst_64 : f32 to vector<2x32xf32>
    %155 = arith.maximumf %153, %154 : vector<2x32xf32>
    %156 = arith.addf %155, %20 : vector<2x32xf32>
    %157 = arith.addf %156, %19 : vector<2x32xf32>
    %158 = vector.broadcast %21 : vector<1x32xf32> to vector<2x32xf32>
    %159 = arith.addf %157, %158 : vector<2x32xf32>
    %cst_65 = arith.constant 0.000000e+00 : f32
    %160 = vector.broadcast %cst_65 : f32 to vector<2x32xf32>
    %161 = arith.maximumf %159, %160 : vector<2x32xf32>
    %162 = arith.truncf %161 : vector<2x32xf32> to vector<2x32xbf16>
    %cst_66 = arith.constant dense<0.000000e+00> : vector<2x16xf32>
    %163 = tpu.matmul %162, %23, %cst_66 {dimension_numbers = #tpu.dot_dimension_numbers<[1], [0], [0], [1], [0, 0, 1, 1], [], []>} : vector<2x32xbf16>, vector<32x16xbf16>, vector<2x16xf32> -> vector<2x16xf32>
    %164 = vector.broadcast %24 : vector<1x16xf32> to vector<2x16xf32>
    %165 = arith.addf %163, %164 : vector<2x16xf32>
    %cst_67 = arith.constant 0.000000e+00 : f32
    %166 = vector.broadcast %cst_67 : f32 to vector<2x16xf32>
    %167 = arith.maximumf %165, %166 : vector<2x16xf32>
    %cst_68 = arith.constant dense<0.000000e+00> : vector<16xf32>
    %168 = vector.multi_reduction <add>, %167, %cst_68 [0] : vector<2x16xf32> to vector<16xf32>
    %169 = vector.shape_cast %168 : vector<16xf32> to vector<1x16xf32>
    %cst_69 = arith.constant 2.000000e+00 : f32
    %170 = vector.broadcast %cst_69 : f32 to vector<1x16xf32>
    %171 = arith.divf %169, %170 : vector<1x16xf32>
    %172 = vector.broadcast %171 : vector<1x16xf32> to vector<2x16xf32>
    %173 = arith.subf %167, %172 : vector<2x16xf32>
    %174 = arith.mulf %173, %173 : vector<2x16xf32>
    %cst_70 = arith.constant dense<0.000000e+00> : vector<16xf32>
    %175 = vector.multi_reduction <add>, %174, %cst_70 [0] : vector<2x16xf32> to vector<16xf32>
    %176 = vector.shape_cast %175 : vector<16xf32> to vector<1x16xf32>
    %cst_71 = arith.constant 2.000000e+00 : f32
    %177 = vector.broadcast %cst_71 : f32 to vector<1x16xf32>
    %178 = arith.divf %176, %177 : vector<1x16xf32>
    %179 = vector.broadcast %171 : vector<1x16xf32> to vector<2x16xf32>
    %180 = arith.subf %167, %179 : vector<2x16xf32>
    %cst_72 = arith.constant 9.99999974E-6 : f32
    %181 = vector.broadcast %cst_72 : f32 to vector<1x16xf32>
    %182 = arith.addf %178, %181 : vector<1x16xf32>
    %183 = math.rsqrt %182 : vector<1x16xf32>
    %184 = vector.broadcast %183 : vector<1x16xf32> to vector<2x16xf32>
    %185 = arith.mulf %180, %184 : vector<2x16xf32>
    %186 = vector.broadcast %25 : vector<1x16xf32> to vector<2x16xf32>
    %187 = arith.mulf %185, %186 : vector<2x16xf32>
    %cst_73 = arith.constant dense<0.000000e+00> : vector<2xf32>
    %188 = vector.multi_reduction <add>, %187, %cst_73 [1] : vector<2x16xf32> to vector<2xf32>
    %189 = vector.broadcast %26 : f32 to vector<2xf32>
    %190 = arith.addf %188, %189 : vector<2xf32>
    %191 = vector.shape_cast %190 : vector<2xf32> to vector<1x2xf32>
    %c1_74 = arith.constant 1 : index
    %c0_75 = arith.constant 0 : index
    %c0_76 = arith.constant 0 : index
    %192 = vector.load %arg10[%c1_74, %c0_75, %c0_76] : memref<2x1x2xf32, #tpu.memory_space<vmem>>, vector<1x1x2xf32>
    %193 = vector.shape_cast %192 : vector<1x1x2xf32> to vector<1x2xf32>
    %194 = vector.shape_cast %191 : vector<1x2xf32> to vector<1x1x2xf32>
    tpu.vector_store %arg10[%c1_74, %c0_75, %c0_76], %194 {strides = array<i32>} : memref<2x1x2xf32, #tpu.memory_space<vmem>>, vector<1x1x2xf32>,
    return
  }
  func.func @transform_0(%arg0: i32) -> (i32, i32, i32, i32) {
    %c0_i32 = arith.constant 0 : i32
    %c0_i32_0 = arith.constant 0 : i32
    %c0_i32_1 = arith.constant 0 : i32
    %c0_i32_2 = arith.constant 0 : i32
    return %arg0, %c0_i32, %c0_i32_0, %c0_i32_1 : i32, i32, i32, i32
  }
  func.func @transform_1(%arg0: i32) -> (i32, i32, i32) {
    %c0_i32 = arith.constant 0 : i32
    %c0_i32_0 = arith.constant 0 : i32
    %c0_i32_1 = arith.constant 0 : i32
    return %arg0, %c0_i32, %c0_i32_0 : i32, i32, i32
  }
  func.func @transform_2(%arg0: i32) -> (i32, i32) {
    %c0_i32 = arith.constant 0 : i32
    %c0_i32_0 = arith.constant 0 : i32
    %c0_i32_1 = arith.constant 0 : i32
    return %c0_i32, %c0_i32_0 : i32, i32
  }
  func.func @transform_3(%arg0: i32) -> (i32, i32) {
    %c0_i32 = arith.constant 0 : i32
    %c0_i32_0 = arith.constant 0 : i32
    %c0_i32_1 = arith.constant 0 : i32
    return %c0_i32, %c0_i32_0 : i32, i32
  }
  func.func @transform_4(%arg0: i32) -> (i32, i32) {
    %c0_i32 = arith.constant 0 : i32
    %c0_i32_0 = arith.constant 0 : i32
    %c0_i32_1 = arith.constant 0 : i32
    return %c0_i32, %c0_i32_0 : i32, i32
  }
  func.func @transform_5(%arg0: i32) -> (i32, i32) {
    %c0_i32 = arith.constant 0 : i32
    %c0_i32_0 = arith.constant 0 : i32
    %c0_i32_1 = arith.constant 0 : i32
    return %c0_i32, %c0_i32_0 : i32, i32
  }
  func.func @transform_6(%arg0: i32) -> (i32, i32) {
    %c0_i32 = arith.constant 0 : i32
    %c0_i32_0 = arith.constant 0 : i32
    %c0_i32_1 = arith.constant 0 : i32
    return %c0_i32, %c0_i32_0 : i32, i32
  }
  func.func @transform_7(%arg0: i32) -> (i32, i32) {
    %c0_i32 = arith.constant 0 : i32
    %c0_i32_0 = arith.constant 0 : i32
    %c0_i32_1 = arith.constant 0 : i32
    return %c0_i32, %c0_i32_0 : i32, i32
  }
  func.func @transform_8(%arg0: i32) -> (i32, i32) {
    %c0_i32 = arith.constant 0 : i32
    %c0_i32_0 = arith.constant 0 : i32
    %c0_i32_1 = arith.constant 0 : i32
    return %c0_i32, %c0_i32_0 : i32, i32
  }
  func.func @transform_9(%arg0: i32) -> (i32, i32, i32) {
    %c0_i32 = arith.constant 0 : i32
    %c0_i32_0 = arith.constant 0 : i32
    %c0_i32_1 = arith.constant 0 : i32
    return %arg0, %c0_i32, %c0_i32_0 : i32, i32, i32
  }
}

</mosaic_0001>

<llo_original>
// kernel: custom-call.4
$region0: #{custom-call.4}
  %s0 = inlined_call_operand.vmem [shape: f32[8,6,32], index: 0, kind: output, shape index: {}]

// kernel: custom-call
$region0: #{custom-call}
  %s0 = inlined_call_operand.vmem [shape: f32[6,32], index: 0, kind: output, shape index: {}]

// kernel: semantic_discriminator_forward.1
$region0: #{semantic_discriminator_forward.1}
  #allocation0 [shape = 'u32[]', space=smem, size = 0x4, offset = 0x4, fixed_abs, tag = 'smem constant byte address 0x4 - core index']
  #allocation1 [shape = 'u32[144,128]{1,0:T(1,128)}', space=vmem, size = 0x12000, scoped, tag = 'internal scratch']
  #allocation2 [shape = 'f32[1,1]{1,0:T(1,128)S(6)}', space=smem, size = 0x200, scoped, tag = 'scoped memory for semantic_discriminator_forward.1']
  %s0 = inlined_call_operand.vmem [shape: f32[2,2,8,32], index: 0, kind: input, shape index: {}]
  %s1 = inlined_call_operand.vmem [shape: f32[2,64,32], index: 1, kind: input, shape index: {}]
  %s2 = inlined_call_operand.vmem [shape: f32[2,32], index: 2, kind: input, shape index: {}]
  %s3 = inlined_call_operand.vmem [shape: f32[2,32], index: 3, kind: input, shape index: {}]
  %s4 = inlined_call_operand.vmem [shape: f32[1,32], index: 4, kind: input, shape index: {}]
  %s5 = inlined_call_operand.vmem [shape: f32[32,16], index: 5, kind: input, shape index: {}]
  %s6 = inlined_call_operand.vmem [shape: f32[1,16], index: 6, kind: input, shape index: {}]
  %s7 = inlined_call_operand.vmem [shape: f32[1,16], index: 7, kind: input, shape index: {}]
  %s8 = inlined_call_operand.<no memory space> [shape: f32[1,1], index: 8, kind: input, shape index: {}]
  %s9 = inlined_call_operand.vmem [shape: f32[2,1,2], index: 9, kind: output, shape index: {}]
  %s10 = sld [smem:[#allocation0]]
  $region46: #{semantic_discriminator_forward.1} parent=0
    _
  %s12 = ssub.s32 1, %s10
  %s13 = scalar_select 0, %s12, %s10
  %14 = sst [smem:[#allocation2]] %s8
  // Predicated region
  $region2: #{semantic_discriminator_forward.1} parent=0 // pred_check
    _
  $region3: #{semantic_discriminator_forward.1} parent=0 // pred_check_branch
    %16 = sbr.rel (0) target = $region5
  $region4: #{semantic_discriminator_forward.1} parent=0 // pred_region
    _
  $region5: #{semantic_discriminator_forward.1} parent=0 // pred_fallthru
    _
  // Predicated region
  $region6: #{semantic_discriminator_forward.1} parent=0 // pred_check
    _
  $region7: #{semantic_discriminator_forward.1} parent=0 // pred_check_branch
    %18 = sbr.rel (0) target = $region9
  $region8: #{semantic_discriminator_forward.1} parent=0 // pred_region
    _
  $region9: #{semantic_discriminator_forward.1} parent=0 // pred_fallthru
    _
  // Predicated region
  $region10: #{semantic_discriminator_forward.1} parent=0 // pred_check
    _
  $region11: #{semantic_discriminator_forward.1} parent=0 // pred_check_branch
    %20 = sbr.rel (0) target = $region13
  $region12: #{semantic_discriminator_forward.1} parent=0 // pred_region
    _
  $region13: #{semantic_discriminator_forward.1} parent=0 // pred_fallthru
    _
  // Predicated region
  $region14: #{semantic_discriminator_forward.1} parent=0 // pred_check
    _
  $region15: #{semantic_discriminator_forward.1} parent=0 // pred_check_branch
    %22 = sbr.rel (0) target = $region17
  $region16: #{semantic_discriminator_forward.1} parent=0 // pred_region
    _
  $region17: #{semantic_discriminator_forward.1} parent=0 // pred_fallthru
    _
  // Predicated region
  $region18: #{semantic_discriminator_forward.1} parent=0 // pred_check
    _
  $region19: #{semantic_discriminator_forward.1} parent=0 // pred_check_branch
    %24 = sbr.rel (0) target = $region21
  $region20: #{semantic_discriminator_forward.1} parent=0 // pred_region
    _
  $region21: #{semantic_discriminator_forward.1} parent=0 // pred_fallthru
    _
  // Predicated region
  $region22: #{semantic_discriminator_forward.1} parent=0 // pred_check
    _
  $region23: #{semantic_discriminator_forward.1} parent=0 // pred_check_branch
    %26 = sbr.rel (0) target = $region25
  $region24: #{semantic_discriminator_forward.1} parent=0 // pred_region
    _
  $region25: #{semantic_discriminator_forward.1} parent=0 // pred_fallthru
    _
  // Predicated region
  $region26: #{semantic_discriminator_forward.1} parent=0 // pred_check
    _
  $region27: #{semantic_discriminator_forward.1} parent=0 // pred_check_branch
    %28 = sbr.rel (0) target = $region29
  $region28: #{semantic_discriminator_forward.1} parent=0 // pred_region
    _
  $region29: #{semantic_discriminator_forward.1} parent=0 // pred_fallthru
    _
  // Predicated region
  $region30: #{semantic_discriminator_forward.1} parent=0 // pred_check
    _
  $region31: #{semantic_discriminator_forward.1} parent=0 // pred_check_branch
    %30 = sbr.rel (0) target = $region33
  $region32: #{semantic_discriminator_forward.1} parent=0 // pred_region
    _
  $region33: #{semantic_discriminator_forward.1} parent=0 // pred_fallthru
    _
  // Predicated region
  $region34: #{semantic_discriminator_forward.1} parent=0 // pred_check
    _
  $region35: #{semantic_discriminator_forward.1} parent=0 // pred_check_branch
    %32 = sbr.rel (0) target = $region37
  $region36: #{semantic_discriminator_forward.1} parent=0 // pred_region
    _
  $region37: #{semantic_discriminator_forward.1} parent=0 // pred_fallthru
    _
  %v34 = vlaneseq
  %v35 = vshrl.u32 %v34, 7
  %v36 = vadd.s32 %v35, 8
  %vm37 = vcmp.lt.s32.totalorder %v35, 0
  %v38 = vsub.s32 0, %v35
  %v39 = vsel %vm37, %v38, %v35
  %v40 = vshrl.u32 %v39, 3
  %v41 = vand.u32 %v39, 7
  %v42 = vsub.s32 0, %v41
  %v43 = vsel %vm37, %v42, %v41
  %vm44 = vcmp.lt.s32.totalorder %v36, 0
  %v45 = vsub.s32 0, %v36
  %v46 = vsel %vm44, %v45, %v36
  %v47 = vshrl.u32 %v46, 3
  %v48 = vand.u32 %v46, 7
  %v49 = vsub.s32 0, %v48
  %v50 = vsel %vm44, %v49, %v48
  %vm51 = vcmp.ne.s32.totalorder %v43, 0
  %vm52 = vcmp.ne.s32.totalorder %v50, 0
  %vm53 = vcmp.lt.s32.totalorder %v43, 0
  %vm54 = vcmp.lt.s32.totalorder %v50, 0
  %vm55 = vmand %vm53, %vm51
  %vm56 = vmand %vm54, %vm52
  %v57 = vadd.s32 %v43, 8
  %v58 = vadd.s32 %v50, 8
  %v59 = vsel %vm55, %v57, %v43
  %v60 = vsel %vm56, %v58, %v50
  %vm61 = vcmp.lt.s32.totalorder %v59, 7
  %vm62 = vcmp.lt.s32.totalorder %v60, 7
  %v63 = vld [vmem:[%s2] sm:$0x3]
  %v64 = vld [vmem:[%s3] sm:$0x3]
  %v65 = vld [vmem:[%s4] sm:$0x1]
  %v66 = vld [vmem:[%s5] sm:$0xff]
  %v67 = vld [vmem:[%s5 + $0x8] sm:$0xff]
  %v68 = vld [vmem:[%s5 + $0x10] sm:$0xff]
  %v69 = vld [vmem:[%s5 + $0x18] sm:$0xff]
  %v70 = vpack.c.bf16 %v67, %v66
  %v71 = vpack.c.bf16 %v69, %v68
  %v72 = vld [vmem:[%s6] sm:$0x1]
  %v73 = vld [vmem:[%s7] sm:$0x1]
  %s74 = sld [smem:[#allocation2]]
  %v75 = vld [vmem:[%s0] sm:$0xff]
  %v76 = vld [vmem:[%s0 + $0x8] sm:$0xff]
  %v77 = vpack.c.bf16 %v76, %v75
  %v78 = vld [vmem:[%s1] sm:$0xff]
  %v79 = vld [vmem:[%s1 + $0x8] sm:$0xff]
  %v80 = vld [vmem:[%s1 + $0x10] sm:$0xff]
  %v81 = vld [vmem:[%s1 + $0x18] sm:$0xff]
  %v82 = vld [vmem:[%s1 + $0x20] sm:$0xff]
  %v83 = vld [vmem:[%s1 + $0x28] sm:$0xff]
  %v84 = vld [vmem:[%s1 + $0x30] sm:$0xff]
  %v85 = vld [vmem:[%s1 + $0x38] sm:$0xff]
  %v86 = vpack.c.bf16 %v79, %v78
  %v87 = vpack.c.bf16 %v81, %v80
  %v88 = vpack.c.bf16 %v83, %v82
  %v89 = vpack.c.bf16 %v85, %v84
  %vm90 = vcmask 261120
  %v92 = vsel %vm90, %v77, 0
  %94 = vmatprep.subr.bf16.mxu0 0
  %95 = vmatpush1.bf16.msra.mxu0 0
  %96 = vmatprep.subr.bf16.mxu0 0
  %97 = vmatpush1.bf16.msra.mxu0 0
  %98 = vmatprep.subr.bf16.mxu0 0
  %99 = vmatpush1.bf16.msra.mxu0 0
  %100 = vmatprep.subr.bf16.mxu0 0
  %101 = vmatpush1.bf16.msra.mxu0 0
  %102 = vmatprep.subr.bf16.mxu0 0
  %103 = vmatpush1.bf16.msra.mxu0 0
  %104 = vmatprep.subr.bf16.mxu0 0
  %105 = vmatpush1.bf16.msra.mxu0 0
  %106 = vmatprep.subr.bf16.mxu0 0
  %107 = vmatpush1.bf16.msra.mxu0 %v89
  %108 = vmatprep.subr.bf16.mxu0 0
  %109 = vmatpush1.bf16.msra.mxu0 %v88
  %110 = vmatprep.subr.bf16.mxu0 0
  %111 = vmatpush2.bf16.msra.mxu0 0
  %112 = vmatprep.subr.bf16.mxu0 0
  %113 = vmatpush2.bf16.msra.mxu0 0
  %114 = vmatprep.subr.bf16.mxu0 0
  %115 = vmatpush2.bf16.msra.mxu0 0
  %116 = vmatprep.subr.bf16.mxu0 0
  %117 = vmatpush2.bf16.msra.mxu0 0
  %118 = vmatprep.subr.bf16.mxu0 0
  %119 = vmatpush2.bf16.msra.mxu0 0
  %120 = vmatprep.subr.bf16.mxu0 0
  %121 = vmatpush2.bf16.msra.mxu0 0
  %122 = vmatprep.subr.bf16.mxu0 0
  %123 = vmatpush2.bf16.msra.mxu0 0
  %124 = vmatprep.subr.bf16.mxu0 0
  %125 = vmatpush2.bf16.msra.mxu0 0
  %126 = vmatprep.mubr.bf16.mxu0 0
  %127 = vmatmul.mubr.bf16.gmra.mxu0 %v92
  %v128 = vpop.f32.mrf.mxu0
  %v129 = vadd.f32 0.0, %v128
  %v130 = vpop.f32.mrf.mxu0
  %v131 = vpop.f32.mrf.mxu0
  %v132 = vadd.f32 0.0, %v131
  %v133 = vpop.f32.mrf.mxu0
  %134 = vdwg.mxu0
  %v135 = vrot.slane %v129, 1
  %v136 = vrot.slane %v132, 1
  %vm137 = vcmp.lt.s32.totalorder %v35, 7
  %v138 = vsel %vm137, %v135, %v136
  %v139 = vsel %vm137, %v136, %v135
  %140 = vmatprep.subr.bf16.mxu0 0
  %141 = vmatpush1.bf16.msra.mxu0 0
  %142 = vmatprep.subr.bf16.mxu0 0
  %143 = vmatpush1.bf16.msra.mxu0 0
  %144 = vmatprep.subr.bf16.mxu0 0
  %145 = vmatpush1.bf16.msra.mxu0 0
  %146 = vmatprep.subr.bf16.mxu0 0
  %147 = vmatpush1.bf16.msra.mxu0 0
  %148 = vmatprep.subr.bf16.mxu0 0
  %149 = vmatpush1.bf16.msra.mxu0 0
  %150 = vmatprep.subr.bf16.mxu0 0
  %151 = vmatpush1.bf16.msra.mxu0 0
  %152 = vmatprep.subr.bf16.mxu0 0
  %153 = vmatpush1.bf16.msra.mxu0 %v87
  %154 = vmatprep.subr.bf16.mxu0 0
  %155 = vmatpush1.bf16.msra.mxu0 %v86
  %156 = vmatprep.subr.bf16.mxu0 0
  %157 = vmatpush2.bf16.msra.mxu0 0
  %158 = vmatprep.subr.bf16.mxu0 0
  %159 = vmatpush2.bf16.msra.mxu0 0
  %160 = vmatprep.subr.bf16.mxu0 0
  %161 = vmatpush2.bf16.msra.mxu0 0
  %162 = vmatprep.subr.bf16.mxu0 0
  %163 = vmatpush2.bf16.msra.mxu0 0
  %164 = vmatprep.subr.bf16.mxu0 0
  %165 = vmatpush2.bf16.msra.mxu0 0
  %166 = vmatprep.subr.bf16.mxu0 0
  %167 = vmatpush2.bf16.msra.mxu0 0
  %168 = vmatprep.subr.bf16.mxu0 0
  %169 = vmatpush2.bf16.msra.mxu0 0
  %170 = vmatprep.subr.bf16.mxu0 0
  %171 = vmatpush2.bf16.msra.mxu0 0
  %172 = vmatprep.mubr.bf16.mxu0 0
  %173 = vmatmul.mubr.bf16.gmra.mxu0 %v92
  %v174 = vpop.f32.mrf.mxu0
  %v175 = vadd.f32 %v138, %v174
  %v176 = vpop.f32.mrf.mxu0
  %v177 = vpop.f32.mrf.mxu0
  %v178 = vadd.f32 %v139, %v177
  %v179 = vpop.f32.mrf.mxu0
  %180 = vdwg.mxu0
  %v181 = vsel %vm61, 1, 0
  %v182 = vsel %vm62, 1, 0
  %vm183 = vcmp.eq.s32.totalorder %v181, 1
  %vm184 = vcmp.eq.s32.totalorder %v182, 1
  %v185 = vsel %vm183, %v175, 0.0
  %v186 = vsel %vm184, %v178, 0.0
  %v187 = vsel %vm90, %v185, 0.0
  %v188 = vsel %vm90, %v186, 0.0
  %v189 = vadd.f32 %v187, %v188
  %v190 = vrot.slane %v189, 4
  %v191 = vadd.f32 %v189, %v190
  %v192 = vrot.slane %v191, 2
  %v193 = vadd.f32 %v191, %v192
  %v194 = vrot.slane %v193, 1
  %v195 = vadd.f32 %v193, %v194
  %v196 = vmul.f32 %v195, 0.071428575
  %v197 = vmul.f32 %v185, %v185
  %v198 = vmul.f32 %v186, %v186
  %v199 = vsel %vm90, %v197, 0.0
  %v200 = vsel %vm90, %v198, 0.0
  %v201 = vadd.f32 %v199, %v200
  %v202 = vrot.slane %v201, 4
  %v203 = vadd.f32 %v201, %v202
  %v204 = vrot.slane %v203, 2
  %v205 = vadd.f32 %v203, %v204
  %v206 = vrot.slane %v205, 1
  %v207 = vadd.f32 %v205, %v206
  %v208 = vmul.f32 %v207, 0.071428575
  %v209 = vmul.f32 %v196, %v196
  %v210 = vsub.f32 %v208, %v209
  %v211 = vmax.f32 %v210, 0.0
  %v212 = vsel %vm183, %v175, -inf
  %v213 = vsel %vm184, %v178, -inf
  %v214 = vsel %vm90, %v212, -inf
  %v215 = vrot.slane %v214, 4
  %v216 = vmax.f32 %v214, %v215
  %v217 = vrot.slane %v216, 2
  %v218 = vmax.f32 %v216, %v217
  %v219 = vrot.slane %v218, 1
  %v220 = vmax.f32 %v218, %v219
  %v221 = vsel %vm90, %v213, -inf
  %v222 = vrot.slane %v221, 4
  %v223 = vmax.f32 %v221, %v222
  %v224 = vrot.slane %v223, 2
  %v225 = vmax.f32 %v223, %v224
  %v226 = vrot.slane %v225, 1
  %v227 = vmax.f32 %v225, %v226
  %v228 = vsub.f32 %v220, %v196
  %v229 = vsub.f32 %v227, %v196
  %v230 = vadd.f32 %v211, 1e-05
  %v231 = vrsqrt.pop %v230
  %v232 = vmul.f32 %v228, %v231
  %v233 = vmul.f32 %v229, %v231
  %v234 = vmax.f32 %v232, 0.0
  %v235 = vmax.f32 %v233, 0.0
  %v237 = vrot.slane %v64, 1
  %v240 = vadd.f32 %v234, %v64
  %v241 = vadd.f32 %v235, %v237
  %v243 = vrot.slane %v63, 1
  %v246 = vadd.f32 %v240, %v63
  %v247 = vadd.f32 %v241, %v243
  %v249 = vlaneseq
  %v250 = vshrl.u32 %v249, 7
  %v251 = vsub.s32 0, %v250
  %v252 = vrot.slane %v65, %v251
  %v254 = vadd.f32 %v246, %v252
  %v255 = vadd.f32 %v247, %v252
  %v256 = vmax.f32 %v254, 0.0
  %v257 = vmax.f32 %v255, 0.0
  %v258 = vpack.c.bf16 %v256, %v256
  %v259 = vpack.c.bf16 %v257, %v257
  %v261 = vlaneseq
  %v262 = vshrl.u32 %v261, 7
  %v263 = vsub.s32 0, %v262
  %v264 = vrot.slane %v72, %v263
  %v268 = vunpack.c.l.b16 %v258
  %v269 = vunpack.c.l.b16 %v259
  %v270 = vrot.slane %v269, 7
  %vm271 = vcmask 1041409
  %v272 = vsel %vm271, %v270, %v268
  %v273 = vpack.c.b16 %v272, %v272
  %v275 = vsel %vm90, %v273, 0
  %277 = vmatprep.subr.bf16.mxu0 0
  %278 = vmatpush1.bf16.msra.mxu0 0
  %279 = vmatprep.subr.bf16.mxu0 0
  %280 = vmatpush1.bf16.msra.mxu0 0
  %281 = vmatprep.subr.bf16.mxu0 0
  %282 = vmatpush1.bf16.msra.mxu0 0
  %283 = vmatprep.subr.bf16.mxu0 0
  %284 = vmatpush1.bf16.msra.mxu0 0
  %285 = vmatprep.subr.bf16.mxu0 0
  %286 = vmatpush1.bf16.msra.mxu0 0
  %287 = vmatprep.subr.bf16.mxu0 0
  %288 = vmatpush1.bf16.msra.mxu0 0
  %289 = vmatprep.subr.bf16.mxu0 0
  %290 = vmatpush1.bf16.msra.mxu0 %v71
  %291 = vmatprep.subr.bf16.mxu0 0
  %292 = vmatpush1.bf16.msra.mxu0 %v70
  %293 = vmatprep.subr.bf16.mxu0 0
  %294 = vmatpush2.bf16.msra.mxu0 0
  %295 = vmatprep.subr.bf16.mxu0 0
  %296 = vmatpush2.bf16.msra.mxu0 0
  %297 = vmatprep.subr.bf16.mxu0 0
  %298 = vmatpush2.bf16.msra.mxu0 0
  %299 = vmatprep.subr.bf16.mxu0 0
  %300 = vmatpush2.bf16.msra.mxu0 0
  %301 = vmatprep.subr.bf16.mxu0 0
  %302 = vmatpush2.bf16.msra.mxu0 0
  %303 = vmatprep.subr.bf16.mxu0 0
  %304 = vmatpush2.bf16.msra.mxu0 0
  %305 = vmatprep.subr.bf16.mxu0 0
  %306 = vmatpush2.bf16.msra.mxu0 0
  %307 = vmatprep.subr.bf16.mxu0 0
  %308 = vmatpush2.bf16.msra.mxu0 0
  %309 = vmatprep.mubr.bf16.mxu0 0
  %310 = vmatmul.mubr.bf16.gmra.mxu0 %v275
  %v311 = vpop.f32.mrf.mxu0
  %v312 = vadd.f32 %v264, %v311
  %v313 = vpop.f32.mrf.mxu0
  %v314 = vpop.f32.mrf.mxu0
  %v315 = vpop.f32.mrf.mxu0
  %316 = vdwg.mxu0
  %v317 = vmax.f32 %v312, 0.0
  %vm318 = vcmask 123904
  %v319 = vsel %vm318, %v317, 0.0
  %v320 = vrot.slane %v319, 4
  %v321 = vadd.f32 %v319, %v320
  %v322 = vrot.slane %v321, 2
  %v323 = vadd.f32 %v321, %v322
  %v324 = vrot.slane %v323, 1
  %v325 = vadd.f32 %v323, %v324
  %v326 = vrcp.pop 2.0
  %v327 = vmul.f32 %v325, %v326
  %v328 = vsub.f32 %v317, %v327
  %v329 = vmul.f32 %v328, %v328
  %v330 = vsel %vm318, %v329, 0.0
  %v331 = vrot.slane %v330, 4
  %v332 = vadd.f32 %v330, %v331
  %v333 = vrot.slane %v332, 2
  %v334 = vadd.f32 %v332, %v333
  %v335 = vrot.slane %v334, 1
  %v336 = vadd.f32 %v334, %v335
  %v337 = vmul.f32 %v336, %v326
  %v338 = vadd.f32 %v337, 1e-05
  %v339 = vrsqrt.pop %v338
  %v340 = vmul.f32 %v328, %v339
  %v342 = vlaneseq
  %v343 = vshrl.u32 %v342, 7
  %v344 = vsub.s32 0, %v343
  %v345 = vrot.slane %v73, %v344
  %v347 = vmul.f32 %v340, %v345
  %v348 = vsel %vm318, %v347, 0.0
  %349 = vadd.xlane.f32.xlu0 %v348
  %v350 = vpop.xlane.xlu0 %349
  %v351 = vstv %s74
  %v352 = vadd.f32 %v350, %v351
  %v354 = vlaneseq
  %v355 = vand.u32 %v354, 127
  %v356 = vlaneseq
  %v357 = vshrl.u32 %v356, 7
  %v358 = vsub.s32 %v355, %v357
  %v359 = vrot.slane %v352, %v358
  %vm361 = vcmask 8192
  %362 = vst.msk [vmem:[%s9] sm:$0x1] %vm361, %v359
  %s363 = scalar_lea.vmem %s0, 16
  %v364 = vld [vmem:[%s363] sm:$0xff]
  %v365 = vld [vmem:[%s363 + $0x8] sm:$0xff]
  %v366 = vpack.c.bf16 %v365, %v364
  %s367 = scalar_lea.vmem %s1, 64
  %v368 = vld [vmem:[%s367] sm:$0xff]
  %v369 = vld [vmem:[%s367 + $0x8] sm:$0xff]
  %v370 = vld [vmem:[%s367 + $0x10] sm:$0xff]
  %v371 = vld [vmem:[%s367 + $0x18] sm:$0xff]
  %v372 = vld [vmem:[%s367 + $0x20] sm:$0xff]
  %v373 = vld [vmem:[%s367 + $0x28] sm:$0xff]
  %v374 = vld [vmem:[%s367 + $0x30] sm:$0xff]
  %v375 = vld [vmem:[%s367 + $0x38] sm:$0xff]
  %v376 = vpack.c.bf16 %v369, %v368
  %v377 = vpack.c.bf16 %v371, %v370
  %v378 = vpack.c.bf16 %v373, %v372
  %v379 = vpack.c.bf16 %v375, %v374
  %v381 = vsel %vm90, %v366, 0
  %383 = vmatprep.subr.bf16.mxu0 0
  %384 = vmatpush1.bf16.msra.mxu0 0
  %385 = vmatprep.subr.bf16.mxu0 0
  %386 = vmatpush1.bf16.msra.mxu0 0
  %387 = vmatprep.subr.bf16.mxu0 0
  %388 = vmatpush1.bf16.msra.mxu0 0
  %389 = vmatprep.subr.bf16.mxu0 0
  %390 = vmatpush1.bf16.msra.mxu0 0
  %391 = vmatprep.subr.bf16.mxu0 0
  %392 = vmatpush1.bf16.msra.mxu0 0
  %393 = vmatprep.subr.bf16.mxu0 0
  %394 = vmatpush1.bf16.msra.mxu0 0
  %395 = vmatprep.subr.bf16.mxu0 0
  %396 = vmatpush1.bf16.msra.mxu0 %v379
  %397 = vmatprep.subr.bf16.mxu0 0
  %398 = vmatpush1.bf16.msra.mxu0 %v378
  %399 = vmatprep.subr.bf16.mxu0 0
  %400 = vmatpush2.bf16.msra.mxu0 0
  %401 = vmatprep.subr.bf16.mxu0 0
  %402 = vmatpush2.bf16.msra.mxu0 0
  %403 = vmatprep.subr.bf16.mxu0 0
  %404 = vmatpush2.bf16.msra.mxu0 0
  %405 = vmatprep.subr.bf16.mxu0 0
  %406 = vmatpush2.bf16.msra.mxu0 0
  %407 = vmatprep.subr.bf16.mxu0 0
  %408 = vmatpush2.bf16.msra.mxu0 0
  %409 = vmatprep.subr.bf16.mxu0 0
  %410 = vmatpush2.bf16.msra.mxu0 0
  %411 = vmatprep.subr.bf16.mxu0 0
  %412 = vmatpush2.bf16.msra.mxu0 0
  %413 = vmatprep.subr.bf16.mxu0 0
  %414 = vmatpush2.bf16.msra.mxu0 0
  %415 = vmatprep.mubr.bf16.mxu0 0
  %416 = vmatmul.mubr.bf16.gmra.mxu0 %v381
  %v417 = vpop.f32.mrf.mxu0
  %v418 = vadd.f32 0.0, %v417
  %v419 = vpop.f32.mrf.mxu0
  %v420 = vpop.f32.mrf.mxu0
  %v421 = vadd.f32 0.0, %v420
  %v422 = vpop.f32.mrf.mxu0
  %423 = vdwg.mxu0
  %v424 = vrot.slane %v418, 1
  %v425 = vrot.slane %v421, 1
  %v426 = vsel %vm137, %v424, %v425
  %v427 = vsel %vm137, %v425, %v424
  %428 = vmatprep.subr.bf16.mxu0 0
  %429 = vmatpush1.bf16.msra.mxu0 0
  %430 = vmatprep.subr.bf16.mxu0 0
  %431 = vmatpush1.bf16.msra.mxu0 0
  %432 = vmatprep.subr.bf16.mxu0 0
  %433 = vmatpush1.bf16.msra.mxu0 0
  %434 = vmatprep.subr.bf16.mxu0 0
  %435 = vmatpush1.bf16.msra.mxu0 0
  %436 = vmatprep.subr.bf16.mxu0 0
  %437 = vmatpush1.bf16.msra.mxu0 0
  %438 = vmatprep.subr.bf16.mxu0 0
  %439 = vmatpush1.bf16.msra.mxu0 0
  %440 = vmatprep.subr.bf16.mxu0 0
  %441 = vmatpush1.bf16.msra.mxu0 %v377
  %442 = vmatprep.subr.bf16.mxu0 0
  %443 = vmatpush1.bf16.msra.mxu0 %v376
  %444 = vmatprep.subr.bf16.mxu0 0
  %445 = vmatpush2.bf16.msra.mxu0 0
  %446 = vmatprep.subr.bf16.mxu0 0
  %447 = vmatpush2.bf16.msra.mxu0 0
  %448 = vmatprep.subr.bf16.mxu0 0
  %449 = vmatpush2.bf16.msra.mxu0 0
  %450 = vmatprep.subr.bf16.mxu0 0
  %451 = vmatpush2.bf16.msra.mxu0 0
  %452 = vmatprep.subr.bf16.mxu0 0
  %453 = vmatpush2.bf16.msra.mxu0 0
  %454 = vmatprep.subr.bf16.mxu0 0
  %455 = vmatpush2.bf16.msra.mxu0 0
  %456 = vmatprep.subr.bf16.mxu0 0
  %457 = vmatpush2.bf16.msra.mxu0 0
  %458 = vmatprep.subr.bf16.mxu0 0
  %459 = vmatpush2.bf16.msra.mxu0 0
  %460 = vmatprep.mubr.bf16.mxu0 0
  %461 = vmatmul.mubr.bf16.gmra.mxu0 %v381
  %v462 = vpop.f32.mrf.mxu0
  %v463 = vadd.f32 %v426, %v462
  %v464 = vpop.f32.mrf.mxu0
  %v465 = vpop.f32.mrf.mxu0
  %v466 = vadd.f32 %v427, %v465
  %v467 = vpop.f32.mrf.mxu0
  %468 = vdwg.mxu0
  %v469 = vsel %vm183, %v463, 0.0
  %v470 = vsel %vm184, %v466, 0.0
  %v471 = vsel %vm90, %v469, 0.0
  %v472 = vsel %vm90, %v470, 0.0
  %v473 = vadd.f32 %v471, %v472
  %v474 = vrot.slane %v473, 4
  %v475 = vadd.f32 %v473, %v474
  %v476 = vrot.slane %v475, 2
  %v477 = vadd.f32 %v475, %v476
  %v478 = vrot.slane %v477, 1
  %v479 = vadd.f32 %v477, %v478
  %v480 = vmul.f32 %v479, 0.071428575
  %v481 = vmul.f32 %v469, %v469
  %v482 = vmul.f32 %v470, %v470
  %v483 = vsel %vm90, %v481, 0.0
  %v484 = vsel %vm90, %v482, 0.0
  %v485 = vadd.f32 %v483, %v484
  %v486 = vrot.slane %v485, 4
  %v487 = vadd.f32 %v485, %v486
  %v488 = vrot.slane %v487, 2
  %v489 = vadd.f32 %v487, %v488
  %v490 = vrot.slane %v489, 1
  %v491 = vadd.f32 %v489, %v490
  %v492 = vmul.f32 %v491, 0.071428575
  %v493 = vmul.f32 %v480, %v480
  %v494 = vsub.f32 %v492, %v493
  %v495 = vmax.f32 %v494, 0.0
  %v496 = vsel %vm183, %v463, -inf
  %v497 = vsel %vm184, %v466, -inf
  %v498 = vsel %vm90, %v496, -inf
  %v499 = vrot.slane %v498, 4
  %v500 = vmax.f32 %v498, %v499
  %v501 = vrot.slane %v500, 2
  %v502 = vmax.f32 %v500, %v501
  %v503 = vrot.slane %v502, 1
  %v504 = vmax.f32 %v502, %v503
  %v505 = vsel %vm90, %v497, -inf
  %v506 = vrot.slane %v505, 4
  %v507 = vmax.f32 %v505, %v506
  %v508 = vrot.slane %v507, 2
  %v509 = vmax.f32 %v507, %v508
  %v510 = vrot.slane %v509, 1
  %v511 = vmax.f32 %v509, %v510
  %v512 = vsub.f32 %v504, %v480
  %v513 = vsub.f32 %v511, %v480
  %v514 = vadd.f32 %v495, 1e-05
  %v515 = vrsqrt.pop %v514
  %v516 = vmul.f32 %v512, %v515
  %v517 = vmul.f32 %v513, %v515
  %v518 = vmax.f32 %v516, 0.0
  %v519 = vmax.f32 %v517, 0.0
  %v520 = vadd.f32 %v518, %v64
  %v521 = vadd.f32 %v519, %v237
  %v522 = vadd.f32 %v520, %v63
  %v523 = vadd.f32 %v521, %v243
  %v524 = vadd.f32 %v522, %v252
  %v525 = vadd.f32 %v523, %v252
  %v526 = vmax.f32 %v524, 0.0
  %v527 = vmax.f32 %v525, 0.0
  %v528 = vpack.c.bf16 %v526, %v526
  %v529 = vpack.c.bf16 %v527, %v527
  %v532 = vunpack.c.l.b16 %v528
  %v533 = vunpack.c.l.b16 %v529
  %v534 = vrot.slane %v533, 7
  %v535 = vsel %vm271, %v534, %v532
  %v536 = vpack.c.b16 %v535, %v535
  %v538 = vsel %vm90, %v536, 0
  %540 = vmatprep.subr.bf16.mxu0 0
  %541 = vmatpush1.bf16.msra.mxu0 0
  %542 = vmatprep.subr.bf16.mxu0 0
  %543 = vmatpush1.bf16.msra.mxu0 0
  %544 = vmatprep.subr.bf16.mxu0 0
  %545 = vmatpush1.bf16.msra.mxu0 0
  %546 = vmatprep.subr.bf16.mxu0 0
  %547 = vmatpush1.bf16.msra.mxu0 0
  %548 = vmatprep.subr.bf16.mxu0 0
  %549 = vmatpush1.bf16.msra.mxu0 0
  %550 = vmatprep.subr.bf16.mxu0 0
  %551 = vmatpush1.bf16.msra.mxu0 0
  %552 = vmatprep.subr.bf16.mxu0 0
  %553 = vmatpush1.bf16.msra.mxu0 %v71
  %554 = vmatprep.subr.bf16.mxu0 0
  %555 = vmatpush1.bf16.msra.mxu0 %v70
  %556 = vmatprep.subr.bf16.mxu0 0
  %557 = vmatpush2.bf16.msra.mxu0 0
  %558 = vmatprep.subr.bf16.mxu0 0
  %559 = vmatpush2.bf16.msra.mxu0 0
  %560 = vmatprep.subr.bf16.mxu0 0
  %561 = vmatpush2.bf16.msra.mxu0 0
  %562 = vmatprep.subr.bf16.mxu0 0
  %563 = vmatpush2.bf16.msra.mxu0 0
  %564 = vmatprep.subr.bf16.mxu0 0
  %565 = vmatpush2.bf16.msra.mxu0 0
  %566 = vmatprep.subr.bf16.mxu0 0
  %567 = vmatpush2.bf16.msra.mxu0 0
  %568 = vmatprep.subr.bf16.mxu0 0
  %569 = vmatpush2.bf16.msra.mxu0 0
  %570 = vmatprep.subr.bf16.mxu0 0
  %571 = vmatpush2.bf16.msra.mxu0 0
  %572 = vmatprep.mubr.bf16.mxu0 0
  %573 = vmatmul.mubr.bf16.gmra.mxu0 %v538
  %v574 = vpop.f32.mrf.mxu0
  %v575 = vadd.f32 %v264, %v574
  %v576 = vpop.f32.mrf.mxu0
  %v577 = vpop.f32.mrf.mxu0
  %v578 = vpop.f32.mrf.mxu0
  %579 = vdwg.mxu0
  %v580 = vmax.f32 %v575, 0.0
  %v581 = vsel %vm318, %v580, 0.0
  %v582 = vrot.slane %v581, 4
  %v583 = vadd.f32 %v581, %v582
  %v584 = vrot.slane %v583, 2
  %v585 = vadd.f32 %v583, %v584
  %v586 = vrot.slane %v585, 1
  %v587 = vadd.f32 %v585, %v586
  %v588 = vmul.f32 %v587, %v326
  %v589 = vsub.f32 %v580, %v588
  %v590 = vmul.f32 %v589, %v589
  %v591 = vsel %vm318, %v590, 0.0
  %v592 = vrot.slane %v591, 4
  %v593 = vadd.f32 %v591, %v592
  %v594 = vrot.slane %v593, 2
  %v595 = vadd.f32 %v593, %v594
  %v596 = vrot.slane %v595, 1
  %v597 = vadd.f32 %v595, %v596
  %v598 = vmul.f32 %v597, %v326
  %v599 = vadd.f32 %v598, 1e-05
  %v600 = vrsqrt.pop %v599
  %v601 = vmul.f32 %v589, %v600
  %v602 = vmul.f32 %v601, %v345
  %v603 = vsel %vm318, %v602, 0.0
  %604 = vadd.xlane.f32.xlu0 %v603
  %v605 = vpop.xlane.xlu0 %604
  %v606 = vadd.f32 %v605, %v351
  %v608 = vlaneseq
  %v609 = vshrl.u32 %v608, 7
  %v610 = vsub.s32 %v355, %v609
  %v611 = vrot.slane %v606, %v610
  %s613 = scalar_lea.vmem %s9, 1
  %614 = vst.msk [vmem:[%s613] sm:$0x1] %vm361, %v611
  // Predicated region
  $region38: #{semantic_discriminator_forward.1} parent=0 // pred_check
    _
  $region39: #{semantic_discriminator_forward.1} parent=0 // pred_check_branch
    %616 = sbr.rel (0) target = $region41
  $region40: #{semantic_discriminator_forward.1} parent=0 // pred_region
    _
  $region41: #{semantic_discriminator_forward.1} parent=0 // pred_fallthru
    _
  // Predicated region
  $region42: #{semantic_discriminator_forward.1} parent=0 // pred_check
    _
  $region43: #{semantic_discriminator_forward.1} parent=0 // pred_check_branch
    %618 = sbr.rel (0) target = $region45
  $region44: #{semantic_discriminator_forward.1} parent=0 // pred_region
    _
  $region45: #{semantic_discriminator_forward.1} parent=0 // pred_fallthru
    _

</llo_original>
